<compile_context>
chip_gen: v7x
topology: tpu7x:2x2x1
jax: 0.10.0
libtpu: 0.0.40
codegen_flags: <defaults>
</compile_context>

<pallas_src>
import jax
import jax.numpy as jnp
from jax.experimental import pallas as pl
from jax.experimental.pallas import tpu as pltpu


def _round_up(x, m):
    return ((x + m - 1) // m) * m


def _cdiv(a, b):
    return (a + b - 1) // b


def mlp_kernel(x_ref,
               w1_ref, b1_ref,
               w2_ref, b2_ref,
               w3_ref, b3_ref,
               w4_ref, b4_ref,
               w5_ref, b5_ref,
               w6_ref, b6_ref,
               o_ref):
    """One batch tile of the 6-layer MLP. Weights/biases are resident across steps."""
    h = x_ref[...]                     # bf16 activations straight from HBM

    def linear_relu(h, w_ref, b_ref):
        # bf16 MXU matmul, f32 accumulation, f32 bias add, ReLU, back to bf16.
        y = jnp.dot(h, w_ref[...], preferred_element_type=jnp.float32) + b_ref[...]
        return jnp.maximum(y, 0.0).astype(jnp.bfloat16)

    h = linear_relu(h, w1_ref, b1_ref)   # linear_1 + relu  (dropout = eval identity)
    h = linear_relu(h, w2_ref, b2_ref)   # linear_2 + relu
    h = linear_relu(h, w3_ref, b3_ref)   # linear_3 + relu
    h = linear_relu(h, w4_ref, b4_ref)   # linear_4 + relu
    h = linear_relu(h, w5_ref, b5_ref)   # linear_5 + relu

    # linear_6 (no relu); compact (tile_b, output_n) f32 store.
    out = jnp.dot(h, w6_ref[...], preferred_element_type=jnp.float32) + b6_ref[...]
    o_ref[...] = out.astype(o_ref.dtype)


def _choose_tiling(B, *, max_tile=4096, split_threshold=512):
    """Pick (tile_b, nb, B_pad).

    - Small B: one sublane-aligned tile (grid overhead would dominate otherwise).
    - Large B: >=2 tiles (v7x megacore sharding), tiles capped at max_tile rows,
      tile ~= ceil(B/k) rounded to 8 so last-tile padding stays small.
    """
    if B <= split_threshold:
        tile_b = _round_up(max(B, 8), 8)
        nb = 1
    else:
        k = max(2, _cdiv(B, max_tile))
        tile_b = _round_up(_cdiv(B, k), 8)
        nb = _cdiv(B, tile_b)
    return tile_b, nb, tile_b * nb


def mlp_forward(x, params):
    """x: (B, input_n, feature_n). params: list of (W_t(in,out), b(1,out)) float32."""
    B = x.shape[0]
    in_feats = x.shape[1] * x.shape[2]
    # Flatten (== torch x.view(-1, in*feat)) and feed bf16 to the kernel: halves
    # input DMA; the kernel computes in bf16 anyway so no numerical change.
    x_flat = x.reshape(B, in_feats).astype(jnp.bfloat16)

    hidden_n = params[0][0].shape[1]
    output_n = params[-1][0].shape[1]

    tile_b, nb, B_pad = _choose_tiling(B)
    if B_pad != B:
        x_flat = jnp.pad(x_flat, ((0, B_pad - B), (0, 0)))

    # --- weights: bf16, biases f32; constant index_map -> DMA'd once -----------
    flat_args = []
    weight_specs = []
    for w, b in params:
        w = w.astype(jnp.bfloat16)
        b = b.astype(jnp.float32)
        flat_args += [w, b]
        weight_specs += [pl.BlockSpec(w.shape, lambda i: (0, 0)),
                         pl.BlockSpec(b.shape, lambda i: (0, 0))]

    flops = 2 * B_pad * (in_feats * hidden_n
                         + 4 * hidden_n * hidden_n
                         + hidden_n * output_n)
    bytes_accessed = (x_flat.size * x_flat.dtype.itemsize          # bf16 input
                      + B_pad * output_n * 4                        # compact f32 output
                      + sum(int(a.size) * a.dtype.itemsize for a in flat_args))

    out = pl.pallas_call(
        mlp_kernel,
        out_shape=jax.ShapeDtypeStruct((B_pad, output_n), jnp.float32),
        grid=(nb,),
        in_specs=[pl.BlockSpec((tile_b, in_feats), lambda i: (i, 0))] + weight_specs,
        out_specs=pl.BlockSpec((tile_b, output_n), lambda i: (i, 0)),
        compiler_params=pltpu.CompilerParams(
            dimension_semantics=("parallel",)),   # megacore sharding on v7x
        cost_estimate=pl.CostEstimate(
            flops=flops, transcendentals=0, bytes_accessed=bytes_accessed),
    )(x_flat, *flat_args)

    if B_pad != B:
        out = out[:B]        # only row padding to strip; columns are already exact
    return out


def init_linear(key, fan_in, fan_out):
    """PyTorch-like init U(-1/sqrt(fan_in), 1/sqrt(fan_in)).

    Returns (W_transposed (fan_in, fan_out), bias_row (1, fan_out)) in float32."""
    kw, kb = jax.random.split(key)
    bound = 1.0 / jnp.sqrt(jnp.float32(fan_in))
    w_t = jax.random.uniform(kw, (fan_in, fan_out), jnp.float32, -bound, bound)
    b = jax.random.uniform(kb, (1, fan_out), jnp.float32, -bound, bound)
    return w_t, b


if __name__ == "__main__":
    # Small shapes consistent with the module's forward.
    input_n, feature_n = 4, 8       # flattened input = 32
    hidden_n = 32
    output_n = 8
    batch = 8

    key = jax.random.PRNGKey(0)
    k_x, k1, k2, k3, k4, k5, k6 = jax.random.split(key, 7)

    x = jax.random.normal(k_x, (batch, input_n, feature_n), jnp.float32)

    params = [
        init_linear(k1, input_n * feature_n, hidden_n),
        init_linear(k2, hidden_n, hidden_n),
        init_linear(k3, hidden_n, hidden_n),
        init_linear(k4, hidden_n, hidden_n),
        init_linear(k5, hidden_n, hidden_n),
        init_linear(k6, hidden_n, output_n),
    ]

    out = mlp_forward(x, params)
    jax.block_until_ready(out)
    assert out.shape == (batch, output_n)

    # Pure-JAX reference mirroring the kernel's bf16-matmul / f32-accumulate math.
    h = x.reshape(batch, -1).astype(jnp.bfloat16)
    ref = None
    for i, (w, b) in enumerate(params):
        y = jnp.dot(h, w.astype(jnp.bfloat16),
                    preferred_element_type=jnp.float32) + b
        if i < 5:
            h = jnp.maximum(y, 0.0).astype(jnp.bfloat16)
        else:
            ref = y
    assert jnp.allclose(out, ref, atol=1e-3, rtol=1e-3), "mismatch vs JAX reference"

    print("KERNEL_OK")
</pallas_src>

<mosaic_0001>
module attributes {stable_mosaic.version = 11 : i64} {
  func.func @mlp_kernel(%arg0: i32, %arg1: memref<8x32xbf16, #tpu.memory_space<vmem>>, %arg2: memref<32x32xbf16, #tpu.memory_space<vmem>>, %arg3: memref<1x32xf32, #tpu.memory_space<vmem>>, %arg4: memref<32x32xbf16, #tpu.memory_space<vmem>>, %arg5: memref<1x32xf32, #tpu.memory_space<vmem>>, %arg6: memref<32x32xbf16, #tpu.memory_space<vmem>>, %arg7: memref<1x32xf32, #tpu.memory_space<vmem>>, %arg8: memref<32x32xbf16, #tpu.memory_space<vmem>>, %arg9: memref<1x32xf32, #tpu.memory_space<vmem>>, %arg10: memref<32x32xbf16, #tpu.memory_space<vmem>>, %arg11: memref<1x32xf32, #tpu.memory_space<vmem>>, %arg12: memref<32x8xbf16, #tpu.memory_space<vmem>>, %arg13: memref<1x8xf32, #tpu.memory_space<vmem>>, %arg14: memref<8x8xf32, #tpu.memory_space<vmem>>) attributes {dimension_semantics = [#tpu.dimension_semantics<parallel>], iteration_bounds = array<i64: 1>, scalar_prefetch = 0 : i64, scratch_operands = 0 : i64, tpu.core_type = #tpu.core_type<tc>, window_params = [{transform_indices = @transform_0, window_bounds = array<i64: 8, 32>}, {pipeline_mode = #tpu.pipeline_mode<synchronous>, transform_indices = @transform_1, window_bounds = array<i64: 32, 32>}, {pipeline_mode = #tpu.pipeline_mode<synchronous>, transform_indices = @transform_2, window_bounds = array<i64: 1, 32>}, {pipeline_mode = #tpu.pipeline_mode<synchronous>, transform_indices = @transform_3, window_bounds = array<i64: 32, 32>}, {pipeline_mode = #tpu.pipeline_mode<synchronous>, transform_indices = @transform_4, window_bounds = array<i64: 1, 32>}, {pipeline_mode = #tpu.pipeline_mode<synchronous>, transform_indices = @transform_5, window_bounds = array<i64: 32, 32>}, {pipeline_mode = #tpu.pipeline_mode<synchronous>, transform_indices = @transform_6, window_bounds = array<i64: 1, 32>}, {pipeline_mode = #tpu.pipeline_mode<synchronous>, transform_indices = @transform_7, window_bounds = array<i64: 32, 32>}, {pipeline_mode = #tpu.pipeline_mode<synchronous>, transform_indices = @transform_8, window_bounds = array<i64: 1, 32>}, {pipeline_mode = #tpu.pipeline_mode<synchronous>, transform_indices = @transform_9, window_bounds = array<i64: 32, 32>}, {pipeline_mode = #tpu.pipeline_mode<synchronous>, transform_indices = @transform_10, window_bounds = array<i64: 1, 32>}, {pipeline_mode = #tpu.pipeline_mode<synchronous>, transform_indices = @transform_11, window_bounds = array<i64: 32, 8>}, {pipeline_mode = #tpu.pipeline_mode<synchronous>, transform_indices = @transform_12, window_bounds = array<i64: 1, 8>}, {transform_indices = @transform_13, window_bounds = array<i64: 8, 8>}]} {
    %c0 = arith.constant 0 : index
    %c0_0 = arith.constant 0 : index
    %0 = vector.load %arg1[%c0, %c0_0] : memref<8x32xbf16, #tpu.memory_space<vmem>>, vector<8x32xbf16>
    %c0_1 = arith.constant 0 : index
    %c0_2 = arith.constant 0 : index
    %1 = vector.load %arg2[%c0_1, %c0_2] : memref<32x32xbf16, #tpu.memory_space<vmem>>, vector<32x32xbf16>
    %cst = arith.constant dense<0.000000e+00> : vector<8x32xf32>
    %2 = tpu.matmul %0, %1, %cst {dimension_numbers = #tpu.dot_dimension_numbers<[1], [0], [0], [1], [0, 0, 1, 1], [], []>} : vector<8x32xbf16>, vector<32x32xbf16>, vector<8x32xf32> -> vector<8x32xf32>
    %c0_3 = arith.constant 0 : index
    %c0_4 = arith.constant 0 : index
    %3 = vector.load %arg3[%c0_3, %c0_4] : memref<1x32xf32, #tpu.memory_space<vmem>>, vector<1x32xf32>
    %4 = vector.broadcast %3 : vector<1x32xf32> to vector<8x32xf32>
    %5 = arith.addf %2, %4 : vector<8x32xf32>
    %cst_5 = arith.constant 0.000000e+00 : f32
    %6 = vector.broadcast %cst_5 : f32 to vector<8x32xf32>
    %7 = arith.maximumf %5, %6 : vector<8x32xf32>
    %8 = arith.truncf %7 : vector<8x32xf32> to vector<8x32xbf16>
    %c0_6 = arith.constant 0 : index
    %c0_7 = arith.constant 0 : index
    %9 = vector.load %arg4[%c0_6, %c0_7] : memref<32x32xbf16, #tpu.memory_space<vmem>>, vector<32x32xbf16>
    %cst_8 = arith.constant dense<0.000000e+00> : vector<8x32xf32>
    %10 = tpu.matmul %8, %9, %cst_8 {dimension_numbers = #tpu.dot_dimension_numbers<[1], [0], [0], [1], [0, 0, 1, 1], [], []>} : vector<8x32xbf16>, vector<32x32xbf16>, vector<8x32xf32> -> vector<8x32xf32>
    %c0_9 = arith.constant 0 : index
    %c0_10 = arith.constant 0 : index
    %11 = vector.load %arg5[%c0_9, %c0_10] : memref<1x32xf32, #tpu.memory_space<vmem>>, vector<1x32xf32>
    %12 = vector.broadcast %11 : vector<1x32xf32> to vector<8x32xf32>
    %13 = arith.addf %10, %12 : vector<8x32xf32>
    %cst_11 = arith.constant 0.000000e+00 : f32
    %14 = vector.broadcast %cst_11 : f32 to vector<8x32xf32>
    %15 = arith.maximumf %13, %14 : vector<8x32xf32>
    %16 = arith.truncf %15 : vector<8x32xf32> to vector<8x32xbf16>
    %c0_12 = arith.constant 0 : index
    %c0_13 = arith.constant 0 : index
    %17 = vector.load %arg6[%c0_12, %c0_13] : memref<32x32xbf16, #tpu.memory_space<vmem>>, vector<32x32xbf16>
    %cst_14 = arith.constant dense<0.000000e+00> : vector<8x32xf32>
    %18 = tpu.matmul %16, %17, %cst_14 {dimension_numbers = #tpu.dot_dimension_numbers<[1], [0], [0], [1], [0, 0, 1, 1], [], []>} : vector<8x32xbf16>, vector<32x32xbf16>, vector<8x32xf32> -> vector<8x32xf32>
    %c0_15 = arith.constant 0 : index
    %c0_16 = arith.constant 0 : index
    %19 = vector.load %arg7[%c0_15, %c0_16] : memref<1x32xf32, #tpu.memory_space<vmem>>, vector<1x32xf32>
    %20 = vector.broadcast %19 : vector<1x32xf32> to vector<8x32xf32>
    %21 = arith.addf %18, %20 : vector<8x32xf32>
    %cst_17 = arith.constant 0.000000e+00 : f32
    %22 = vector.broadcast %cst_17 : f32 to vector<8x32xf32>
    %23 = arith.maximumf %21, %22 : vector<8x32xf32>
    %24 = arith.truncf %23 : vector<8x32xf32> to vector<8x32xbf16>
    %c0_18 = arith.constant 0 : index
    %c0_19 = arith.constant 0 : index
    %25 = vector.load %arg8[%c0_18, %c0_19] : memref<32x32xbf16, #tpu.memory_space<vmem>>, vector<32x32xbf16>
    %cst_20 = arith.constant dense<0.000000e+00> : vector<8x32xf32>
    %26 = tpu.matmul %24, %25, %cst_20 {dimension_numbers = #tpu.dot_dimension_numbers<[1], [0], [0], [1], [0, 0, 1, 1], [], []>} : vector<8x32xbf16>, vector<32x32xbf16>, vector<8x32xf32> -> vector<8x32xf32>
    %c0_21 = arith.constant 0 : index
    %c0_22 = arith.constant 0 : index
    %27 = vector.load %arg9[%c0_21, %c0_22] : memref<1x32xf32, #tpu.memory_space<vmem>>, vector<1x32xf32>
    %28 = vector.broadcast %27 : vector<1x32xf32> to vector<8x32xf32>
    %29 = arith.addf %26, %28 : vector<8x32xf32>
    %cst_23 = arith.constant 0.000000e+00 : f32
    %30 = vector.broadcast %cst_23 : f32 to vector<8x32xf32>
    %31 = arith.maximumf %29, %30 : vector<8x32xf32>
    %32 = arith.truncf %31 : vector<8x32xf32> to vector<8x32xbf16>
    %c0_24 = arith.constant 0 : index
    %c0_25 = arith.constant 0 : index
    %33 = vector.load %arg10[%c0_24, %c0_25] : memref<32x32xbf16, #tpu.memory_space<vmem>>, vector<32x32xbf16>
    %cst_26 = arith.constant dense<0.000000e+00> : vector<8x32xf32>
    %34 = tpu.matmul %32, %33, %cst_26 {dimension_numbers = #tpu.dot_dimension_numbers<[1], [0], [0], [1], [0, 0, 1, 1], [], []>} : vector<8x32xbf16>, vector<32x32xbf16>, vector<8x32xf32> -> vector<8x32xf32>
    %c0_27 = arith.constant 0 : index
    %c0_28 = arith.constant 0 : index
    %35 = vector.load %arg11[%c0_27, %c0_28] : memref<1x32xf32, #tpu.memory_space<vmem>>, vector<1x32xf32>
    %36 = vector.broadcast %35 : vector<1x32xf32> to vector<8x32xf32>
    %37 = arith.addf %34, %36 : vector<8x32xf32>
    %cst_29 = arith.constant 0.000000e+00 : f32
    %38 = vector.broadcast %cst_29 : f32 to vector<8x32xf32>
    %39 = arith.maximumf %37, %38 : vector<8x32xf32>
    %40 = arith.truncf %39 : vector<8x32xf32> to vector<8x32xbf16>
    %c0_30 = arith.constant 0 : index
    %c0_31 = arith.constant 0 : index
    %41 = vector.load %arg12[%c0_30, %c0_31] : memref<32x8xbf16, #tpu.memory_space<vmem>>, vector<32x8xbf16>
    %cst_32 = arith.constant dense<0.000000e+00> : vector<8x8xf32>
    %42 = tpu.matmul %40, %41, %cst_32 {dimension_numbers = #tpu.dot_dimension_numbers<[1], [0], [0], [1], [0, 0, 1, 1], [], []>} : vector<8x32xbf16>, vector<32x8xbf16>, vector<8x8xf32> -> vector<8x8xf32>
    %c0_33 = arith.constant 0 : index
    %c0_34 = arith.constant 0 : index
    %43 = vector.load %arg13[%c0_33, %c0_34] : memref<1x8xf32, #tpu.memory_space<vmem>>, vector<1x8xf32>
    %44 = vector.broadcast %43 : vector<1x8xf32> to vector<8x8xf32>
    %45 = arith.addf %42, %44 : vector<8x8xf32>
    %c0_35 = arith.constant 0 : index
    %c0_36 = arith.constant 0 : index
    %46 = vector.load %arg14[%c0_35, %c0_36] : memref<8x8xf32, #tpu.memory_space<vmem>>, vector<8x8xf32>
    tpu.vector_store %arg14[%c0_35, %c0_36], %45 {strides = array<i32>} : memref<8x8xf32, #tpu.memory_space<vmem>>, vector<8x8xf32>,
    return
  }
  func.func @transform_0(%arg0: i32) -> (i32, i32) {
    %c0_i32 = arith.constant 0 : i32
    %c0_i32_0 = arith.constant 0 : i32
    return %arg0, %c0_i32 : i32, i32
  }
  func.func @transform_1(%arg0: i32) -> (i32, i32) {
    %c0_i32 = arith.constant 0 : i32
    %c0_i32_0 = arith.constant 0 : i32
    %c0_i32_1 = arith.constant 0 : i32
    return %c0_i32, %c0_i32_0 : i32, i32
  }
  func.func @transform_2(%arg0: i32) -> (i32, i32) {
    %c0_i32 = arith.constant 0 : i32
    %c0_i32_0 = arith.constant 0 : i32
    %c0_i32_1 = arith.constant 0 : i32
    return %c0_i32, %c0_i32_0 : i32, i32
  }
  func.func @transform_3(%arg0: i32) -> (i32, i32) {
    %c0_i32 = arith.constant 0 : i32
    %c0_i32_0 = arith.constant 0 : i32
    %c0_i32_1 = arith.constant 0 : i32
    return %c0_i32, %c0_i32_0 : i32, i32
  }
  func.func @transform_4(%arg0: i32) -> (i32, i32) {
    %c0_i32 = arith.constant 0 : i32
    %c0_i32_0 = arith.constant 0 : i32
    %c0_i32_1 = arith.constant 0 : i32
    return %c0_i32, %c0_i32_0 : i32, i32
  }
  func.func @transform_5(%arg0: i32) -> (i32, i32) {
    %c0_i32 = arith.constant 0 : i32
    %c0_i32_0 = arith.constant 0 : i32
    %c0_i32_1 = arith.constant 0 : i32
    return %c0_i32, %c0_i32_0 : i32, i32
  }
  func.func @transform_6(%arg0: i32) -> (i32, i32) {
    %c0_i32 = arith.constant 0 : i32
    %c0_i32_0 = arith.constant 0 : i32
    %c0_i32_1 = arith.constant 0 : i32
    return %c0_i32, %c0_i32_0 : i32, i32
  }
  func.func @transform_7(%arg0: i32) -> (i32, i32) {
    %c0_i32 = arith.constant 0 : i32
    %c0_i32_0 = arith.constant 0 : i32
    %c0_i32_1 = arith.constant 0 : i32
    return %c0_i32, %c0_i32_0 : i32, i32
  }
  func.func @transform_8(%arg0: i32) -> (i32, i32) {
    %c0_i32 = arith.constant 0 : i32
    %c0_i32_0 = arith.constant 0 : i32
    %c0_i32_1 = arith.constant 0 : i32
    return %c0_i32, %c0_i32_0 : i32, i32
  }
  func.func @transform_9(%arg0: i32) -> (i32, i32) {
    %c0_i32 = arith.constant 0 : i32
    %c0_i32_0 = arith.constant 0 : i32
    %c0_i32_1 = arith.constant 0 : i32
    return %c0_i32, %c0_i32_0 : i32, i32
  }
  func.func @transform_10(%arg0: i32) -> (i32, i32) {
    %c0_i32 = arith.constant 0 : i32
    %c0_i32_0 = arith.constant 0 : i32
    %c0_i32_1 = arith.constant 0 : i32
    return %c0_i32, %c0_i32_0 : i32, i32
  }
  func.func @transform_11(%arg0: i32) -> (i32, i32) {
    %c0_i32 = arith.constant 0 : i32
    %c0_i32_0 = arith.constant 0 : i32
    %c0_i32_1 = arith.constant 0 : i32
    return %c0_i32, %c0_i32_0 : i32, i32
  }
  func.func @transform_12(%arg0: i32) -> (i32, i32) {
    %c0_i32 = arith.constant 0 : i32
    %c0_i32_0 = arith.constant 0 : i32
    %c0_i32_1 = arith.constant 0 : i32
    return %c0_i32, %c0_i32_0 : i32, i32
  }
  func.func @transform_13(%arg0: i32) -> (i32, i32) {
    %c0_i32 = arith.constant 0 : i32
    %c0_i32_0 = arith.constant 0 : i32
    return %arg0, %c0_i32 : i32, i32
  }
}

</mosaic_0001>

<llo_original>
// kernel: tpu_custom_call.1
$region0: #{tpu_custom_call.1}
  #allocation0 [shape = 'u32[]', space=smem, size = 0x4, offset = 0x4, fixed_abs, tag = 'smem constant byte address 0x4 - core index']
  #allocation1 [shape = 'u32[144,128]{1,0:T(1,128)}', space=vmem, size = 0x12000, scoped, tag = 'internal scratch']
  %s0 = inlined_call_operand.hbm [shape: bf16[8,32], index: 0, kind: input, shape index: {}]
  %s1 = inlined_call_operand.vmem [shape: bf16[32,32], index: 1, kind: input, shape index: {}]
  %s2 = inlined_call_operand.vmem [shape: f32[1,32], index: 2, kind: input, shape index: {}]
  %s3 = inlined_call_operand.hbm [shape: bf16[32,32], index: 3, kind: input, shape index: {}]
  %s4 = inlined_call_operand.vmem [shape: f32[1,32], index: 4, kind: input, shape index: {}]
  %s5 = inlined_call_operand.vmem [shape: bf16[32,32], index: 5, kind: input, shape index: {}]
  %s6 = inlined_call_operand.hbm [shape: f32[1,32], index: 6, kind: input, shape index: {}]
  %s7 = inlined_call_operand.hbm [shape: bf16[32,32], index: 7, kind: input, shape index: {}]
  %s8 = inlined_call_operand.hbm [shape: f32[1,32], index: 8, kind: input, shape index: {}]
  %s9 = inlined_call_operand.vmem [shape: bf16[32,32], index: 9, kind: input, shape index: {}]
  %s10 = inlined_call_operand.vmem [shape: f32[1,32], index: 10, kind: input, shape index: {}]
  %s11 = inlined_call_operand.vmem [shape: bf16[32,8], index: 11, kind: input, shape index: {}]
  %s12 = inlined_call_operand.vmem [shape: f32[1,8], index: 12, kind: input, shape index: {}]
  %s13 = inlined_call_operand.hbm [shape: f32[8,8], index: 13, kind: output, shape index: {}]
  %s14 = sld [smem:[#allocation0]]
  $region82: #{tpu_custom_call.1} parent=0
    _
  %s16 = ssub.s32 1, %s14
  %s17 = scalar_select 0, %s16, %s14
  $region1: #{tpu_custom_call.1} parent=0
    #allocation2 [shape = 'u8[2048]{0}', space=vmem, size = 0x800, scoped, tag = 'input window, operand 0, single buffered']
    #allocation3 [shape = 's32[1]{0}', space=sflag, size = 0x4, scoped, tag = 'scoped memory for tpu_custom_call.1']
    #allocation4 [shape = 's32[1]{0}', space=sflag, size = 0x4, scoped, tag = 'scoped memory for tpu_custom_call.1']
    #allocation5 [shape = 'u8[8192]{0}', space=vmem, size = 0x2000, scoped, tag = 'input window, operand 3, single buffered']
    #allocation6 [shape = 's32[1]{0}', space=sflag, size = 0x4, scoped, tag = 'scoped memory for tpu_custom_call.1']
    #allocation7 [shape = 'u8[512]{0}', space=vmem, size = 0x400, scoped, tag = 'input window, operand 6, single buffered']
    #allocation8 [shape = 'u8[8192]{0}', space=vmem, size = 0x2000, scoped, tag = 'input window, operand 7, single buffered']
    #allocation9 [shape = 's32[1]{0}', space=sflag, size = 0x4, scoped, tag = 'scoped memory for tpu_custom_call.1']
    #allocation10 [shape = 'u8[512]{0}', space=vmem, size = 0x400, scoped, tag = 'input window, operand 8, single buffered']
    #allocation11 [shape = 'u8[4096]{0}', space=vmem, size = 0x1000, scoped, tag = 'output window, operand 0, single buffered']
    %18 = vsyncpa [#allocation3], 0
    %19 = vsyncpa [#allocation6], 0
    %20 = vsyncpa [#allocation9], 0
    %21 = vsyncpa [#allocation4], 0
    // Predicated region
    $region2: #{tpu_custom_call.1} parent=1 // pred_check
      _
    $region3: #{tpu_custom_call.1} parent=1 // pred_check_branch
      %23 = sbr.rel (0) target = $region5
    $region4: #{tpu_custom_call.1} parent=1 // pred_region
      %s25 = ssub.s32 64, 64
      %26 = vsyncadd [#allocation3], %s25
      %s28 = sshll.u32 [#allocation2], 4
      %s29 = int_to_ptr.vmem [resolvable:$true] %s28
      %31 = dma.hbm_to_vmem [thread:$0]  %s0, 64, %s29, [#allocation3]
    $region5: #{tpu_custom_call.1} parent=1 // pred_fallthru
      _
    // Predicated region
    $region6: #{tpu_custom_call.1} parent=1 // pred_check
      _
    $region7: #{tpu_custom_call.1} parent=1 // pred_check_branch
      %33 = sbr.rel (0) target = $region9
    $region8: #{tpu_custom_call.1} parent=1 // pred_region
      _
    $region9: #{tpu_custom_call.1} parent=1 // pred_fallthru
      _
    // Predicated region
    $region10: #{tpu_custom_call.1} parent=1 // pred_check
      _
    $region11: #{tpu_custom_call.1} parent=1 // pred_check_branch
      %35 = sbr.rel (0) target = $region13
    $region12: #{tpu_custom_call.1} parent=1 // pred_region
      _
    $region13: #{tpu_custom_call.1} parent=1 // pred_fallthru
      _
    // Predicated region
    $region14: #{tpu_custom_call.1} parent=1 // pred_check
      _
    $region15: #{tpu_custom_call.1} parent=1 // pred_check_branch
      %37 = sbr.rel (0) target = $region17
    $region16: #{tpu_custom_call.1} parent=1 // pred_region
      %s39 = ssub.s32 256, 256
      %40 = vsyncadd [#allocation6], %s39
      %s41 = sshll.u32 [#allocation5], 4
      %s42 = int_to_ptr.vmem [resolvable:$true] %s41
      %47 = dma.hbm_to_vmem [thread:$0]  %s3, 256, %s42, [#allocation6], 64, 64, 4
    $region17: #{tpu_custom_call.1} parent=1 // pred_fallthru
      _
    // Predicated region
    $region18: #{tpu_custom_call.1} parent=1 // pred_check
      _
    $region19: #{tpu_custom_call.1} parent=1 // pred_check_branch
      %49 = sbr.rel (0) target = $region21
    $region20: #{tpu_custom_call.1} parent=1 // pred_region
      _
    $region21: #{tpu_custom_call.1} parent=1 // pred_fallthru
      _
    // Predicated region
    $region22: #{tpu_custom_call.1} parent=1 // pred_check
      _
    $region23: #{tpu_custom_call.1} parent=1 // pred_check_branch
      %51 = sbr.rel (0) target = $region25
    $region24: #{tpu_custom_call.1} parent=1 // pred_region
      _
    $region25: #{tpu_custom_call.1} parent=1 // pred_fallthru
      _
    // Predicated region
    $region26: #{tpu_custom_call.1} parent=1 // pred_check
      _
    $region27: #{tpu_custom_call.1} parent=1 // pred_check_branch
      %53 = sbr.rel (0) target = $region29
    $region28: #{tpu_custom_call.1} parent=1 // pred_region
      %s55 = ssub.s32 16, 16
      %56 = vsyncadd [#allocation6], %s55
      %s58 = sshll.u32 [#allocation7], 4
      %s59 = int_to_ptr.vmem [resolvable:$true] %s58
      %61 = dma.hbm_to_vmem [thread:$0]  %s6, 16, %s59, [#allocation6]
    $region29: #{tpu_custom_call.1} parent=1 // pred_fallthru
      _
    // Predicated region
    $region30: #{tpu_custom_call.1} parent=1 // pred_check
      _
    $region31: #{tpu_custom_call.1} parent=1 // pred_check_branch
      %63 = sbr.rel (0) target = $region33
    $region32: #{tpu_custom_call.1} parent=1 // pred_region
      %s65 = ssub.s32 256, 256
      %66 = vsyncadd [#allocation9], %s65
      %s67 = sshll.u32 [#allocation8], 4
      %s68 = int_to_ptr.vmem [resolvable:$true] %s67
      %73 = dma.hbm_to_vmem [thread:$0]  %s7, 256, %s68, [#allocation9], 64, 64, 4
    $region33: #{tpu_custom_call.1} parent=1 // pred_fallthru
      _
    // Predicated region
    $region34: #{tpu_custom_call.1} parent=1 // pred_check
      _
    $region35: #{tpu_custom_call.1} parent=1 // pred_check_branch
      %75 = sbr.rel (0) target = $region37
    $region36: #{tpu_custom_call.1} parent=1 // pred_region
      %s77 = ssub.s32 16, 16
      %78 = vsyncadd [#allocation9], %s77
      %s80 = sshll.u32 [#allocation10], 4
      %s81 = int_to_ptr.vmem [resolvable:$true] %s80
      %83 = dma.hbm_to_vmem [thread:$0]  %s8, 16, %s81, [#allocation9]
    $region37: #{tpu_custom_call.1} parent=1 // pred_fallthru
      _
    // Predicated region
    $region38: #{tpu_custom_call.1} parent=1 // pred_check
      _
    $region39: #{tpu_custom_call.1} parent=1 // pred_check_branch
      %85 = sbr.rel (0) target = $region41
    $region40: #{tpu_custom_call.1} parent=1 // pred_region
      _
    $region41: #{tpu_custom_call.1} parent=1 // pred_fallthru
      _
    // Predicated region
    $region42: #{tpu_custom_call.1} parent=1 // pred_check
      _
    $region43: #{tpu_custom_call.1} parent=1 // pred_check_branch
      %87 = sbr.rel (0) target = $region45
    $region44: #{tpu_custom_call.1} parent=1 // pred_region
      _
    $region45: #{tpu_custom_call.1} parent=1 // pred_fallthru
      _
    // Predicated region
    $region46: #{tpu_custom_call.1} parent=1 // pred_check
      _
    $region47: #{tpu_custom_call.1} parent=1 // pred_check_branch
      %89 = sbr.rel (0) target = $region49
    $region48: #{tpu_custom_call.1} parent=1 // pred_region
      _
    $region49: #{tpu_custom_call.1} parent=1 // pred_fallthru
      _
    // Predicated region
    $region50: #{tpu_custom_call.1} parent=1 // pred_check
      _
    $region51: #{tpu_custom_call.1} parent=1 // pred_check_branch
      %91 = sbr.rel (0) target = $region53
    $region52: #{tpu_custom_call.1} parent=1 // pred_region
      _
    $region53: #{tpu_custom_call.1} parent=1 // pred_fallthru
      _
    // Predicated region
    $region54: #{tpu_custom_call.1} parent=1 // pred_check
      _
    $region55: #{tpu_custom_call.1} parent=1 // pred_check_branch
      %93 = sbr.rel (0) target = $region57
    $region56: #{tpu_custom_call.1} parent=1 // pred_region
      %94 = dma.done [#allocation3], 64
    $region57: #{tpu_custom_call.1} parent=1 // pred_fallthru
      _
    // Predicated region
    $region58: #{tpu_custom_call.1} parent=1 // pred_check
      _
    $region59: #{tpu_custom_call.1} parent=1 // pred_check_branch
      %96 = sbr.rel (0) target = $region61
    $region60: #{tpu_custom_call.1} parent=1 // pred_region
      %97 = dma.done [#allocation6], 256
    $region61: #{tpu_custom_call.1} parent=1 // pred_fallthru
      _
    // Predicated region
    $region62: #{tpu_custom_call.1} parent=1 // pred_check
      _
    $region63: #{tpu_custom_call.1} parent=1 // pred_check_branch
      %99 = sbr.rel (0) target = $region65
    $region64: #{tpu_custom_call.1} parent=1 // pred_region
      %100 = dma.done [#allocation6], 16
    $region65: #{tpu_custom_call.1} parent=1 // pred_fallthru
      _
    // Predicated region
    $region66: #{tpu_custom_call.1} parent=1 // pred_check
      _
    $region67: #{tpu_custom_call.1} parent=1 // pred_check_branch
      %102 = sbr.rel (0) target = $region69
    $region68: #{tpu_custom_call.1} parent=1 // pred_region
      %103 = dma.done [#allocation9], 256
    $region69: #{tpu_custom_call.1} parent=1 // pred_fallthru
      _
    // Predicated region
    $region70: #{tpu_custom_call.1} parent=1 // pred_check
      _
    $region71: #{tpu_custom_call.1} parent=1 // pred_check_branch
      %105 = sbr.rel (0) target = $region73
    $region72: #{tpu_custom_call.1} parent=1 // pred_region
      %106 = dma.done [#allocation9], 16
    $region73: #{tpu_custom_call.1} parent=1 // pred_fallthru
      _
    %v108 = vld [vmem:[#allocation2] sm:$0xf]
    %v109 = vld [vmem:[%s1] sm:$0xf]
    %v110 = vld [vmem:[%s1 + $0x4] sm:$0xf]
    %v111 = vld [vmem:[%s1 + $0x8] sm:$0xf]
    %v112 = vld [vmem:[%s1 + $0xc] sm:$0xf]
    %v113 = vld [vmem:[%s2] sm:$0x1]
    %v115 = vlaneseq
    %v116 = vshrl.u32 %v115, 7
    %v117 = vsub.s32 0, %v116
    %v118 = vrot.slane %v113, %v117
    %v124 = vunpack.c.l.b16 %v109
    %v125 = vunpack.c.l.b16 %v110
    %v126 = vunpack.c.l.b16 %v111
    %v127 = vunpack.c.l.b16 %v112
    %v128 = vpack.c.b16 %v125, %v124
    %v129 = vpack.c.b16 %v127, %v126
    %vm132 = vcmask 261120
    %v134 = vsel %vm132, %v108, 0
    %136 = vmatprep.subr.bf16.mxu0 0
    %137 = vmatpush1.bf16.msra.mxu0 %v128
    %138 = vmatprep.subr.bf16.mxu0 0
    %139 = vmatpush1.bf16.msra.mxu0 %v129
    %140 = vmatprep.subr.bf16.mxu0 0
    %141 = vmatpush1.bf16.msra.mxu0 0
    %142 = vmatprep.subr.bf16.mxu0 0
    %143 = vmatpush1.bf16.msra.mxu0 0
    %144 = vmatprep.subr.bf16.mxu0 0
    %145 = vmatpush1.bf16.msra.mxu0 0
    %146 = vmatprep.subr.bf16.mxu0 0
    %147 = vmatpush1.bf16.msra.mxu0 0
    %148 = vmatprep.subr.bf16.mxu0 0
    %149 = vmatpush1.bf16.msra.mxu0 0
    %150 = vmatprep.subr.bf16.mxu0 0
    %151 = vmatpush1.bf16.msra.mxu0 0
    %152 = vmatprep.subr.bf16.mxu0 0
    %153 = vmatpush1.bf16.msra.mxu0 0
    %154 = vmatprep.subr.bf16.mxu0 0
    %155 = vmatpush1.bf16.msra.mxu0 0
    %156 = vmatprep.subr.bf16.mxu0 0
    %157 = vmatpush1.bf16.msra.mxu0 0
    %158 = vmatprep.subr.bf16.mxu0 0
    %159 = vmatpush1.bf16.msra.mxu0 0
    %160 = vmatprep.subr.bf16.mxu0 0
    %161 = vmatpush1.bf16.msra.mxu0 0
    %162 = vmatprep.subr.bf16.mxu0 0
    %163 = vmatpush1.bf16.msra.mxu0 0
    %164 = vmatprep.subr.bf16.mxu0 0
    %165 = vmatpush1.bf16.msra.mxu0 0
    %166 = vmatprep.subr.bf16.mxu0 0
    %167 = vmatpush1.bf16.msra.mxu0 0
    %168 = vmatprep.mubr.bf16.mxu0 0
    %169 = vmatmul.mubr.bf16.gmra.mrb[0].mxu0 %v134
    %v170 = vpop.f32.mrb[0].mxu0
    %v171 = vadd.f32 %v118, %v170
    %v172 = vpop.f32.mrb[0].mxu0
    %v173 = vpop.f32.mrb[0].mxu0
    %v174 = vpop.f32.mrb[0].mxu0
    %175 = vdwg.mxu0
    %v176 = vmax.f32 %v171, 0.0
    %v177 = vpack.c.bf16 %v176, %v176
    %v178 = vld [vmem:[#allocation5] sm:$0xf]
    %v179 = vld [vmem:[#allocation5 + $0x4] sm:$0xf]
    %v180 = vld [vmem:[#allocation5 + $0x8] sm:$0xf]
    %v181 = vld [vmem:[#allocation5 + $0xc] sm:$0xf]
    %v182 = vld [vmem:[%s4] sm:$0x1]
    %v184 = vlaneseq
    %v185 = vshrl.u32 %v184, 7
    %v186 = vsub.s32 0, %v185
    %v187 = vrot.slane %v182, %v186
    %v193 = vunpack.c.l.b16 %v178
    %v194 = vunpack.c.l.b16 %v179
    %v195 = vunpack.c.l.b16 %v180
    %v196 = vunpack.c.l.b16 %v181
    %v197 = vpack.c.b16 %v194, %v193
    %v198 = vpack.c.b16 %v196, %v195
    %v202 = vsel %vm132, %v177, 0
    %204 = vmatprep.subr.bf16.mxu0 0
    %205 = vmatpush1.bf16.msra.mxu0 %v197
    %206 = vmatprep.subr.bf16.mxu0 0
    %207 = vmatpush1.bf16.msra.mxu0 %v198
    %208 = vmatprep.subr.bf16.mxu0 0
    %209 = vmatpush1.bf16.msra.mxu0 0
    %210 = vmatprep.subr.bf16.mxu0 0
    %211 = vmatpush1.bf16.msra.mxu0 0
    %212 = vmatprep.subr.bf16.mxu0 0
    %213 = vmatpush1.bf16.msra.mxu0 0
    %214 = vmatprep.subr.bf16.mxu0 0
    %215 = vmatpush1.bf16.msra.mxu0 0
    %216 = vmatprep.subr.bf16.mxu0 0
    %217 = vmatpush1.bf16.msra.mxu0 0
    %218 = vmatprep.subr.bf16.mxu0 0
    %219 = vmatpush1.bf16.msra.mxu0 0
    %220 = vmatprep.subr.bf16.mxu0 0
    %221 = vmatpush1.bf16.msra.mxu0 0
    %222 = vmatprep.subr.bf16.mxu0 0
    %223 = vmatpush1.bf16.msra.mxu0 0
    %224 = vmatprep.subr.bf16.mxu0 0
    %225 = vmatpush1.bf16.msra.mxu0 0
    %226 = vmatprep.subr.bf16.mxu0 0
    %227 = vmatpush1.bf16.msra.mxu0 0
    %228 = vmatprep.subr.bf16.mxu0 0
    %229 = vmatpush1.bf16.msra.mxu0 0
    %230 = vmatprep.subr.bf16.mxu0 0
    %231 = vmatpush1.bf16.msra.mxu0 0
    %232 = vmatprep.subr.bf16.mxu0 0
    %233 = vmatpush1.bf16.msra.mxu0 0
    %234 = vmatprep.subr.bf16.mxu0 0
    %235 = vmatpush1.bf16.msra.mxu0 0
    %236 = vmatprep.mubr.bf16.mxu0 0
    %237 = vmatmul.mubr.bf16.gmra.mrb[0].mxu0 %v202
    %v238 = vpop.f32.mrb[0].mxu0
    %v239 = vadd.f32 %v187, %v238
    %v240 = vpop.f32.mrb[0].mxu0
    %v241 = vpop.f32.mrb[0].mxu0
    %v242 = vpop.f32.mrb[0].mxu0
    %243 = vdwg.mxu0
    %v244 = vmax.f32 %v239, 0.0
    %v245 = vpack.c.bf16 %v244, %v244
    %v246 = vld [vmem:[%s5] sm:$0xf]
    %v247 = vld [vmem:[%s5 + $0x4] sm:$0xf]
    %v248 = vld [vmem:[%s5 + $0x8] sm:$0xf]
    %v249 = vld [vmem:[%s5 + $0xc] sm:$0xf]
    %v250 = vld [vmem:[#allocation7] sm:$0x1]
    %v252 = vlaneseq
    %v253 = vshrl.u32 %v252, 7
    %v254 = vsub.s32 0, %v253
    %v255 = vrot.slane %v250, %v254
    %v261 = vunpack.c.l.b16 %v246
    %v262 = vunpack.c.l.b16 %v247
    %v263 = vunpack.c.l.b16 %v248
    %v264 = vunpack.c.l.b16 %v249
    %v265 = vpack.c.b16 %v262, %v261
    %v266 = vpack.c.b16 %v264, %v263
    %v270 = vsel %vm132, %v245, 0
    %272 = vmatprep.subr.bf16.mxu0 0
    %273 = vmatpush1.bf16.msra.mxu0 %v265
    %274 = vmatprep.subr.bf16.mxu0 0
    %275 = vmatpush1.bf16.msra.mxu0 %v266
    %276 = vmatprep.subr.bf16.mxu0 0
    %277 = vmatpush1.bf16.msra.mxu0 0
    %278 = vmatprep.subr.bf16.mxu0 0
    %279 = vmatpush1.bf16.msra.mxu0 0
    %280 = vmatprep.subr.bf16.mxu0 0
    %281 = vmatpush1.bf16.msra.mxu0 0
    %282 = vmatprep.subr.bf16.mxu0 0
    %283 = vmatpush1.bf16.msra.mxu0 0
    %284 = vmatprep.subr.bf16.mxu0 0
    %285 = vmatpush1.bf16.msra.mxu0 0
    %286 = vmatprep.subr.bf16.mxu0 0
    %287 = vmatpush1.bf16.msra.mxu0 0
    %288 = vmatprep.subr.bf16.mxu0 0
    %289 = vmatpush1.bf16.msra.mxu0 0
    %290 = vmatprep.subr.bf16.mxu0 0
    %291 = vmatpush1.bf16.msra.mxu0 0
    %292 = vmatprep.subr.bf16.mxu0 0
    %293 = vmatpush1.bf16.msra.mxu0 0
    %294 = vmatprep.subr.bf16.mxu0 0
    %295 = vmatpush1.bf16.msra.mxu0 0
    %296 = vmatprep.subr.bf16.mxu0 0
    %297 = vmatpush1.bf16.msra.mxu0 0
    %298 = vmatprep.subr.bf16.mxu0 0
    %299 = vmatpush1.bf16.msra.mxu0 0
    %300 = vmatprep.subr.bf16.mxu0 0
    %301 = vmatpush1.bf16.msra.mxu0 0
    %302 = vmatprep.subr.bf16.mxu0 0
    %303 = vmatpush1.bf16.msra.mxu0 0
    %304 = vmatprep.mubr.bf16.mxu0 0
    %305 = vmatmul.mubr.bf16.gmra.mrb[0].mxu0 %v270
    %v306 = vpop.f32.mrb[0].mxu0
    %v307 = vadd.f32 %v255, %v306
    %v308 = vpop.f32.mrb[0].mxu0
    %v309 = vpop.f32.mrb[0].mxu0
    %v310 = vpop.f32.mrb[0].mxu0
    %311 = vdwg.mxu0
    %v312 = vmax.f32 %v307, 0.0
    %v313 = vpack.c.bf16 %v312, %v312
    %v314 = vld [vmem:[#allocation8] sm:$0xf]
    %v315 = vld [vmem:[#allocation8 + $0x4] sm:$0xf]
    %v316 = vld [vmem:[#allocation8 + $0x8] sm:$0xf]
    %v317 = vld [vmem:[#allocation8 + $0xc] sm:$0xf]
    %v318 = vld [vmem:[#allocation10] sm:$0x1]
    %v320 = vlaneseq
    %v321 = vshrl.u32 %v320, 7
    %v322 = vsub.s32 0, %v321
    %v323 = vrot.slane %v318, %v322
    %v329 = vunpack.c.l.b16 %v314
    %v330 = vunpack.c.l.b16 %v315
    %v331 = vunpack.c.l.b16 %v316
    %v332 = vunpack.c.l.b16 %v317
    %v333 = vpack.c.b16 %v330, %v329
    %v334 = vpack.c.b16 %v332, %v331
    %v338 = vsel %vm132, %v313, 0
    %340 = vmatprep.subr.bf16.mxu0 0
    %341 = vmatpush1.bf16.msra.mxu0 %v333
    %342 = vmatprep.subr.bf16.mxu0 0
    %343 = vmatpush1.bf16.msra.mxu0 %v334
    %344 = vmatprep.subr.bf16.mxu0 0
    %345 = vmatpush1.bf16.msra.mxu0 0
    %346 = vmatprep.subr.bf16.mxu0 0
    %347 = vmatpush1.bf16.msra.mxu0 0
    %348 = vmatprep.subr.bf16.mxu0 0
    %349 = vmatpush1.bf16.msra.mxu0 0
    %350 = vmatprep.subr.bf16.mxu0 0
    %351 = vmatpush1.bf16.msra.mxu0 0
    %352 = vmatprep.subr.bf16.mxu0 0
    %353 = vmatpush1.bf16.msra.mxu0 0
    %354 = vmatprep.subr.bf16.mxu0 0
    %355 = vmatpush1.bf16.msra.mxu0 0
    %356 = vmatprep.subr.bf16.mxu0 0
    %357 = vmatpush1.bf16.msra.mxu0 0
    %358 = vmatprep.subr.bf16.mxu0 0
    %359 = vmatpush1.bf16.msra.mxu0 0
    %360 = vmatprep.subr.bf16.mxu0 0
    %361 = vmatpush1.bf16.msra.mxu0 0
    %362 = vmatprep.subr.bf16.mxu0 0
    %363 = vmatpush1.bf16.msra.mxu0 0
    %364 = vmatprep.subr.bf16.mxu0 0
    %365 = vmatpush1.bf16.msra.mxu0 0
    %366 = vmatprep.subr.bf16.mxu0 0
    %367 = vmatpush1.bf16.msra.mxu0 0
    %368 = vmatprep.subr.bf16.mxu0 0
    %369 = vmatpush1.bf16.msra.mxu0 0
    %370 = vmatprep.subr.bf16.mxu0 0
    %371 = vmatpush1.bf16.msra.mxu0 0
    %372 = vmatprep.mubr.bf16.mxu0 0
    %373 = vmatmul.mubr.bf16.gmra.mrb[0].mxu0 %v338
    %v374 = vpop.f32.mrb[0].mxu0
    %v375 = vadd.f32 %v323, %v374
    %v376 = vpop.f32.mrb[0].mxu0
    %v377 = vpop.f32.mrb[0].mxu0
    %v378 = vpop.f32.mrb[0].mxu0
    %379 = vdwg.mxu0
    %v380 = vmax.f32 %v375, 0.0
    %v381 = vpack.c.bf16 %v380, %v380
    %v382 = vld [vmem:[%s9] sm:$0xf]
    %v383 = vld [vmem:[%s9 + $0x4] sm:$0xf]
    %v384 = vld [vmem:[%s9 + $0x8] sm:$0xf]
    %v385 = vld [vmem:[%s9 + $0xc] sm:$0xf]
    %v386 = vld [vmem:[%s10] sm:$0x1]
    %v388 = vlaneseq
    %v389 = vshrl.u32 %v388, 7
    %v390 = vsub.s32 0, %v389
    %v391 = vrot.slane %v386, %v390
    %v397 = vunpack.c.l.b16 %v382
    %v398 = vunpack.c.l.b16 %v383
    %v399 = vunpack.c.l.b16 %v384
    %v400 = vunpack.c.l.b16 %v385
    %v401 = vpack.c.b16 %v398, %v397
    %v402 = vpack.c.b16 %v400, %v399
    %v406 = vsel %vm132, %v381, 0
    %408 = vmatprep.subr.bf16.mxu0 0
    %409 = vmatpush1.bf16.msra.mxu0 %v401
    %410 = vmatprep.subr.bf16.mxu0 0
    %411 = vmatpush1.bf16.msra.mxu0 %v402
    %412 = vmatprep.subr.bf16.mxu0 0
    %413 = vmatpush1.bf16.msra.mxu0 0
    %414 = vmatprep.subr.bf16.mxu0 0
    %415 = vmatpush1.bf16.msra.mxu0 0
    %416 = vmatprep.subr.bf16.mxu0 0
    %417 = vmatpush1.bf16.msra.mxu0 0
    %418 = vmatprep.subr.bf16.mxu0 0
    %419 = vmatpush1.bf16.msra.mxu0 0
    %420 = vmatprep.subr.bf16.mxu0 0
    %421 = vmatpush1.bf16.msra.mxu0 0
    %422 = vmatprep.subr.bf16.mxu0 0
    %423 = vmatpush1.bf16.msra.mxu0 0
    %424 = vmatprep.subr.bf16.mxu0 0
    %425 = vmatpush1.bf16.msra.mxu0 0
    %426 = vmatprep.subr.bf16.mxu0 0
    %427 = vmatpush1.bf16.msra.mxu0 0
    %428 = vmatprep.subr.bf16.mxu0 0
    %429 = vmatpush1.bf16.msra.mxu0 0
    %430 = vmatprep.subr.bf16.mxu0 0
    %431 = vmatpush1.bf16.msra.mxu0 0
    %432 = vmatprep.subr.bf16.mxu0 0
    %433 = vmatpush1.bf16.msra.mxu0 0
    %434 = vmatprep.subr.bf16.mxu0 0
    %435 = vmatpush1.bf16.msra.mxu0 0
    %436 = vmatprep.subr.bf16.mxu0 0
    %437 = vmatpush1.bf16.msra.mxu0 0
    %438 = vmatprep.subr.bf16.mxu0 0
    %439 = vmatpush1.bf16.msra.mxu0 0
    %440 = vmatprep.mubr.bf16.mxu0 0
    %441 = vmatmul.mubr.bf16.gmra.mrb[0].mxu0 %v406
    %v442 = vpop.f32.mrb[0].mxu0
    %v443 = vadd.f32 %v391, %v442
    %v444 = vpop.f32.mrb[0].mxu0
    %v445 = vpop.f32.mrb[0].mxu0
    %v446 = vpop.f32.mrb[0].mxu0
    %447 = vdwg.mxu0
    %v448 = vmax.f32 %v443, 0.0
    %v449 = vpack.c.bf16 %v448, %v448
    %v450 = vld [vmem:[%s11] sm:$0xf]
    %v451 = vld [vmem:[%s11 + $0x4] sm:$0xf]
    %v452 = vld [vmem:[%s11 + $0x8] sm:$0xf]
    %v453 = vld [vmem:[%s11 + $0xc] sm:$0xf]
    %v454 = vld [vmem:[%s12] sm:$0x1]
    %v456 = vlaneseq
    %v457 = vshrl.u32 %v456, 7
    %v458 = vsub.s32 0, %v457
    %v459 = vrot.slane %v454, %v458
    %v465 = vunpack.c.l.b16 %v450
    %v466 = vunpack.c.l.b16 %v451
    %v467 = vunpack.c.l.b16 %v452
    %v468 = vunpack.c.l.b16 %v453
    %v469 = vpack.c.b16 %v466, %v465
    %v470 = vpack.c.b16 %v468, %v467
    %v474 = vsel %vm132, %v449, 0
    %476 = vmatprep.subr.bf16.mxu0 0
    %477 = vmatpush1.bf16.msra.mxu0 %v469
    %478 = vmatprep.subr.bf16.mxu0 0
    %479 = vmatpush1.bf16.msra.mxu0 %v470
    %480 = vmatprep.subr.bf16.mxu0 0
    %481 = vmatpush1.bf16.msra.mxu0 0
    %482 = vmatprep.subr.bf16.mxu0 0
    %483 = vmatpush1.bf16.msra.mxu0 0
    %484 = vmatprep.subr.bf16.mxu0 0
    %485 = vmatpush1.bf16.msra.mxu0 0
    %486 = vmatprep.subr.bf16.mxu0 0
    %487 = vmatpush1.bf16.msra.mxu0 0
    %488 = vmatprep.subr.bf16.mxu0 0
    %489 = vmatpush1.bf16.msra.mxu0 0
    %490 = vmatprep.subr.bf16.mxu0 0
    %491 = vmatpush1.bf16.msra.mxu0 0
    %492 = vmatprep.subr.bf16.mxu0 0
    %493 = vmatpush1.bf16.msra.mxu0 0
    %494 = vmatprep.subr.bf16.mxu0 0
    %495 = vmatpush1.bf16.msra.mxu0 0
    %496 = vmatprep.subr.bf16.mxu0 0
    %497 = vmatpush1.bf16.msra.mxu0 0
    %498 = vmatprep.subr.bf16.mxu0 0
    %499 = vmatpush1.bf16.msra.mxu0 0
    %500 = vmatprep.subr.bf16.mxu0 0
    %501 = vmatpush1.bf16.msra.mxu0 0
    %502 = vmatprep.subr.bf16.mxu0 0
    %503 = vmatpush1.bf16.msra.mxu0 0
    %504 = vmatprep.subr.bf16.mxu0 0
    %505 = vmatpush1.bf16.msra.mxu0 0
    %506 = vmatprep.subr.bf16.mxu0 0
    %507 = vmatpush1.bf16.msra.mxu0 0
    %508 = vmatprep.mubr.bf16.mxu0 0
    %509 = vmatmul.mubr.bf16.gmra.mrb[0].mxu0 %v474
    %v510 = vpop.f32.mrb[0].mxu0
    %v511 = vadd.f32 %v459, %v510
    %v512 = vpop.f32.mrb[0].mxu0
    %v513 = vpop.f32.mrb[0].mxu0
    %v514 = vpop.f32.mrb[0].mxu0
    %515 = vdwg.mxu0
    %vm516 = vcmask 64512
    %517 = vst.msk [vmem:[#allocation11] sm:$0xff] %vm516, %v511
    // Predicated region
    $region74: #{tpu_custom_call.1} parent=1 // pred_check
      _
    $region75: #{tpu_custom_call.1} parent=1 // pred_check_branch
      %519 = sbr.rel (0) target = $region77
    $region76: #{tpu_custom_call.1} parent=1 // pred_region
      %s521 = ssub.s32 128, 128
      %522 = vsyncadd [#allocation4], %s521
      %s524 = sshll.u32 [#allocation11], 4
      %s525 = int_to_ptr.vmem [resolvable:$true] %s524
      %527 = dma.vmem_to_hbm [thread:$0]  %s525, 128, %s13, [#allocation4]
    $region77: #{tpu_custom_call.1} parent=1 // pred_fallthru
      _
    // Predicated region
    $region78: #{tpu_custom_call.1} parent=1 // pred_check
      _
    $region79: #{tpu_custom_call.1} parent=1 // pred_check_branch
      %529 = sbr.rel (0) target = $region81
    $region80: #{tpu_custom_call.1} parent=1 // pred_region
      %530 = dma.done [#allocation4], 128
    $region81: #{tpu_custom_call.1} parent=1 // pred_fallthru
      _
    %531 = vsyncpa [#allocation3], 1
    %532 = vsyncpa [#allocation6], 1
    %533 = vsyncpa [#allocation9], 1
    %534 = vsyncpa [#allocation4], 1

</llo_original>
